<compile_context>
chip_gen: v6e
topology: v6e:2x2x1
jax: 0.10.0
libtpu: 0.0.40
codegen_flags: <defaults>
</compile_context>

<pallas_src>
import functools

import jax
import jax.numpy as jnp
from jax.experimental import pallas as pl
from jax.experimental.pallas import tpu as pltpu

EPSILON = 1e-10

_MAX_BLOCK_ELEMS = 1 << 20        # 1M f32 elems = 4 MiB per block
_MIN_BLOCK_ELEMS = 128 * 1024     # 128K elems = 512 KiB floor per block
_TARGET_STEPS = 8                 # >= 3-4 grid steps per TensorCore (megacore)
_VMEM_LIMIT_BYTES = 48 * 1024 * 1024


def _round_up(x, m):
    return -(-x // m) * m


# ---------------------------------------------------------------------------
# Kernels: elementwise, compute in f32, store in the output dtype.
# ---------------------------------------------------------------------------
def _plain_kernel(x_ref, o_ref, *, log_transform):
    x = x_ref[...].astype(jnp.float32)          # native-dtype load, f32 in-register
    if log_transform:
        x = jnp.log(x + EPSILON)                # EUP; hides under DMA
    o_ref[...] = x.astype(o_ref.dtype)


def _norm_const_kernel(x_ref, o_ref, *, log_transform, mean, inv_std):
    x = x_ref[...].astype(jnp.float32)
    if log_transform:
        x = jnp.log(x + EPSILON)
    # (x - mean) * (1/std): multiply instead of divide keeps the EUP free for log.
    o_ref[...] = ((x - mean) * inv_std).astype(o_ref.dtype)


def _norm_smem_kernel(stats_ref, x_ref, o_ref, *, log_transform):
    # Fallback when mean/std are traced values: scalars live in SMEM.
    mean = stats_ref[0]                          # load scalars once into locals
    inv_std = stats_ref[1]
    x = x_ref[...].astype(jnp.float32)
    if log_transform:
        x = jnp.log(x + EPSILON)
    o_ref[...] = ((x - mean) * inv_std).astype(o_ref.dtype)


# ---------------------------------------------------------------------------
# Tiling helpers.
# ---------------------------------------------------------------------------
def _pick_lane_width(n):
    """Largest lane-dense width (multiple of 128) that divides n, else 512."""
    for c in (1024, 512, 256, 128):
        if n % c == 0:
            return c
    return 512


def _rows_per_block(rows, lane_width):
    max_r = max(8, _MAX_BLOCK_ELEMS // lane_width)
    min_r = max(8, _MIN_BLOCK_ELEMS // lane_width)
    if rows <= min_r:
        return rows                              # single full-extent block
    r = _round_up(pl.cdiv(rows, _TARGET_STEPS), 8)
    return max(min_r, min(r, max_r))


def _run_body(body, *, log_transform, stats_static, stats_dynamic, out_dtype):
    rows, lane_width = body.shape
    r = _rows_per_block(rows, lane_width)
    grid = (pl.cdiv(rows, r),)                   # ragged last row-block masked by Pallas
    blk = pl.BlockSpec((r, lane_width), lambda i: (i, 0))

    if stats_static is not None:
        mean, inv_std = stats_static
        kernel = functools.partial(_norm_const_kernel, log_transform=log_transform,
                                   mean=mean, inv_std=inv_std)
        in_specs = [blk]
        args = (body,)
    elif stats_dynamic is not None:
        kernel = functools.partial(_norm_smem_kernel, log_transform=log_transform)
        in_specs = [pl.BlockSpec(memory_space=pltpu.MemorySpace.SMEM), blk]
        args = (stats_dynamic, body)
    else:
        kernel = functools.partial(_plain_kernel, log_transform=log_transform)
        in_specs = [blk]
        args = (body,)

    return pl.pallas_call(
        kernel,
        out_shape=jax.ShapeDtypeStruct((rows, lane_width), out_dtype),
        grid_spec=pltpu.PrefetchScalarGridSpec(
            num_scalar_prefetch=0,
            grid=grid,
            in_specs=in_specs,
            out_specs=blk,
        ),
        compiler_params=pltpu.CompilerParams(
            dimension_semantics=("parallel",),
            vmem_limit_bytes=_VMEM_LIMIT_BYTES),
    )(*args)


def _transform_jnp(x, *, log_transform, mean, inv_std, out_dtype):
    """Tiny (< lane_width elems) ragged-tail epilogue in plain JAX."""
    x = x.astype(jnp.float32)
    if log_transform:
        x = jnp.log(x + EPSILON)
    if mean is not None:
        x = (x - mean) * inv_std
    return x.astype(out_dtype)


# ---------------------------------------------------------------------------
# Public wrapper.
# ---------------------------------------------------------------------------
def time_interval_transform(time_intervals, *, log_transform=True,
                            normalize=False, mean=None, std=None):
    """Pallas implementation of TimeIntervalTransform.transform()."""
    x = jnp.asarray(time_intervals)              # native dtype; no f32 copy here

    # Identity config: pure copy -> skip the kernel launch + HBM round trip.
    if not log_transform and not normalize:
        return x

    orig_shape = x.shape
    out_dtype = x.dtype if jnp.issubdtype(x.dtype, jnp.floating) else jnp.float32

    # Normalization stats: bake as compile-time constants when concrete (module
    # stats always are); fall back to an SMEM operand only for traced values.
    stats_static = None
    stats_dynamic = None
    norm_mean = norm_inv_std = None
    if normalize:
        try:
            stats_static = (float(mean), 1.0 / float(std))
            norm_mean, norm_inv_std = stats_static
        except (TypeError, jax.errors.ConcretizationTypeError):
            m = jnp.asarray(mean, jnp.float32)
            inv = 1.0 / jnp.asarray(std, jnp.float32)
            stats_dynamic = jnp.stack([m, inv])
            norm_mean, norm_inv_std = m, inv

    flat = x.reshape(-1)                         # metadata-only flatten
    n = flat.shape[0]
    if n == 0:
        return jnp.zeros(orig_shape, out_dtype)

    lane_width = _pick_lane_width(n)
    rows = n // lane_width
    n_body = rows * lane_width

    parts = []
    if rows > 0:
        body = flat[:n_body].reshape(rows, lane_width)
        body_out = _run_body(body, log_transform=log_transform,
                             stats_static=stats_static,
                             stats_dynamic=stats_dynamic,
                             out_dtype=out_dtype)
        parts.append(body_out.reshape(-1))
    if n_body < n:
        # Sub-lane_width ragged tail: trivial jnp op (per review) — never pad the
        # whole array (that would be an extra HBM pass).
        parts.append(_transform_jnp(flat[n_body:], log_transform=log_transform,
                                    mean=norm_mean, inv_std=norm_inv_std,
                                    out_dtype=out_dtype))
    out = parts[0] if len(parts) == 1 else jnp.concatenate(parts)
    return out.reshape(orig_shape)


class TimeIntervalTransformJAX:
    """Mirror of the PyTorch TimeIntervalTransform; stats built in __init__."""
    EPSILON = EPSILON

    def __init__(self, log_transform=True, normalize=False, time_intervals=None):
        self.enc_dim = 1
        self.log_transform = log_transform
        self.normalize = normalize
        if self.log_transform and time_intervals is not None:
            self.time_intervals = jnp.log(time_intervals + EPSILON)
        else:
            self.time_intervals = time_intervals
        if self.normalize:
            # Mirrors torch (raises if time_intervals is None, like the reference).
            self.mean_time_interval = jnp.mean(self.time_intervals)
            # torch.Tensor.std() is unbiased (ddof=1).
            self.std_time_interval = jnp.std(self.time_intervals, ddof=1)
        else:
            self.mean_time_interval = None
            self.std_time_interval = None

    def __call__(self, time_intervals):
        return self.transform(time_intervals)

    def transform(self, time_intervals):
        return time_interval_transform(
            time_intervals,
            log_transform=self.log_transform,
            normalize=self.normalize,
            mean=self.mean_time_interval,
            std=self.std_time_interval,
        )

    def reverse_transform(self, time_intervals):
        # TODO(synk): reverse_transform() is not part of forward(); plain JAX suffices.
        x = jnp.asarray(time_intervals)
        if self.log_transform:
            x = jnp.exp(x)
        if self.normalize:
            return x * self.std_time_interval + self.mean_time_interval
        return x


def _reference(x, log_transform, normalize, mean, std):
    x = jnp.asarray(x, jnp.float32)
    if log_transform:
        x = jnp.log(x + EPSILON)
    if normalize:
        x = (x - mean) / std
    return x


if __name__ == "__main__":
    key = jax.random.PRNGKey(0)
    k1, k2, k3, k4 = jax.random.split(key, 4)

    # Strictly positive per-event time intervals for the module's __init__ stats.
    init_intervals = jnp.exp(jax.random.normal(k1, (1000,), jnp.float32))

    # Mode 1: default (log only); lane-aligned size -> single (4, 1024) block.
    x1 = jnp.exp(jax.random.normal(k2, (4096,), jnp.float32))
    m1 = TimeIntervalTransformJAX(log_transform=True, normalize=False)
    y1 = jax.block_until_ready(m1(x1))
    assert y1.shape == x1.shape and y1.dtype == jnp.float32
    assert jnp.allclose(y1, _reference(x1, True, False, None, None),
                        rtol=1e-5, atol=1e-5)

    # Mode 2: log + normalize with __init__-time stats; 2-D input whose flat size
    # is not a multiple of 128 -> Pallas body + jnp tail epilogue.
    m2 = TimeIntervalTransformJAX(log_transform=True, normalize=True,
                                  time_intervals=init_intervals)
    x2 = jnp.exp(jax.random.normal(k3, (8, 500), jnp.float32))
    y2 = jax.block_until_ready(m2(x2))
    ref2 = _reference(x2, True, True, m2.mean_time_interval, m2.std_time_interval)
    assert y2.shape == x2.shape
    assert jnp.allclose(y2, ref2, rtol=1e-5, atol=1e-5)

    # Mode 3: larger ragged 1-D input -> multi-step pipelined (256, 512) grid + tail.
    x3 = jnp.exp(jax.random.normal(k4, (150001,), jnp.float32))
    y3 = jax.block_until_ready(m2(x3))
    ref3 = _reference(x3, True, True, m2.mean_time_interval, m2.std_time_interval)
    assert y3.shape == x3.shape
    assert jnp.allclose(y3, ref3, rtol=1e-5, atol=1e-5)

    # Mode 4: identity config short-circuits (no kernel launch), returns input.
    m4 = TimeIntervalTransformJAX(log_transform=False, normalize=False)
    y4 = jax.block_until_ready(m4(x1))
    assert jnp.allclose(y4, x1, rtol=1e-6, atol=1e-6)

    print("KERNEL_OK")
</pallas_src>

<mosaic_0001>
module attributes {stable_mosaic.version = 11 : i64} {
  func.func @_plain_kernel(%arg0: i32, %arg1: memref<4x1024xf32, #tpu.memory_space<vmem>>, %arg2: memref<4x1024xf32, #tpu.memory_space<vmem>>) attributes {dimension_semantics = [#tpu.dimension_semantics<parallel>], iteration_bounds = array<i64: 1>, scalar_prefetch = 0 : i64, scratch_operands = 0 : i64, tpu.core_type = #tpu.core_type<tc>, window_params = [{transform_indices = @transform_0, window_bounds = array<i64: 4, 1024>}, {transform_indices = @transform_1, window_bounds = array<i64: 4, 1024>}]} {
    %c0 = arith.constant 0 : index
    %c0_0 = arith.constant 0 : index
    %0 = vector.load %arg1[%c0, %c0_0] : memref<4x1024xf32, #tpu.memory_space<vmem>>, vector<4x1024xf32>
    %cst = arith.constant 1.000000e-10 : f32
    %1 = vector.broadcast %cst : f32 to vector<4x1024xf32>
    %2 = arith.addf %0, %1 : vector<4x1024xf32>
    %3 = math.log %2 : vector<4x1024xf32>
    %c0_1 = arith.constant 0 : index
    %c0_2 = arith.constant 0 : index
    %4 = vector.load %arg2[%c0_1, %c0_2] : memref<4x1024xf32, #tpu.memory_space<vmem>>, vector<4x1024xf32>
    tpu.vector_store %arg2[%c0_1, %c0_2], %3 {strides = array<i32>} : memref<4x1024xf32, #tpu.memory_space<vmem>>, vector<4x1024xf32>,
    return
  }
  func.func @transform_0(%arg0: i32) -> (i32, i32) {
    %c0_i32 = arith.constant 0 : i32
    %c0_i32_0 = arith.constant 0 : i32
    return %arg0, %c0_i32 : i32, i32
  }
  func.func @transform_1(%arg0: i32) -> (i32, i32) {
    %c0_i32 = arith.constant 0 : i32
    %c0_i32_0 = arith.constant 0 : i32
    return %arg0, %c0_i32 : i32, i32
  }
}

</mosaic_0001>

<llo_original>
// kernel: tpu_custom_call.1
$region0: #{tpu_custom_call.1}
  #allocation0 [shape = 'u32[]', space=smem, size = 0x4, offset = 0x4, fixed_abs, tag = 'smem constant byte address 0x4 - core index']
  #allocation1 [shape = 'u32[144,128]{1,0:T(1,128)}', space=vmem, size = 0x12000, scoped, tag = 'internal scratch']
  %s0 = inlined_call_operand.hbm [shape: f32[4,1024], index: 0, kind: input, shape index: {}]
  %s1 = inlined_call_operand.hbm [shape: f32[4,1024], index: 1, kind: output, shape index: {}]
  %s2 = sld [smem:[#allocation0]]
  $region18: #{tpu_custom_call.1} parent=0
    _
  %s4 = ssub.s32 1, %s2
  %s5 = scalar_select 0, %s4, %s2
  $region1: #{tpu_custom_call.1} parent=0
    #allocation2 [shape = 'u8[16384]{0}', space=vmem, size = 0x4000, scoped, tag = 'input window, operand 0, single buffered']
    #allocation3 [shape = 's32[1]{0}', space=sflag, size = 0x4, scoped, tag = 'scoped memory for tpu_custom_call.1']
    #allocation4 [shape = 's32[1]{0}', space=sflag, size = 0x4, scoped, tag = 'scoped memory for tpu_custom_call.1']
    #allocation5 [shape = 'u8[16384]{0}', space=vmem, size = 0x4000, scoped, tag = 'output window, operand 0, single buffered']
    %6 = vsyncpa [#allocation3], 0
    %7 = vsyncpa [#allocation4], 0
    // Predicated region
    $region2: #{tpu_custom_call.1} parent=1 // pred_check
      _
    $region3: #{tpu_custom_call.1} parent=1 // pred_check_branch
      %9 = sbr.rel (0) target = $region5
    $region4: #{tpu_custom_call.1} parent=1 // pred_region
      %s11 = ssub.s32 512, 512
      %12 = vsyncadd [#allocation3], %s11
      %s14 = sshll.u32 [#allocation2], 4
      %s15 = int_to_ptr.vmem [resolvable:$true] %s14
      %17 = dma.hbm_to_vmem [thread:$0]  %s0, 512, %s15, [#allocation3]
    $region5: #{tpu_custom_call.1} parent=1 // pred_fallthru
      _
    // Predicated region
    $region6: #{tpu_custom_call.1} parent=1 // pred_check
      _
    $region7: #{tpu_custom_call.1} parent=1 // pred_check_branch
      %19 = sbr.rel (0) target = $region9
    $region8: #{tpu_custom_call.1} parent=1 // pred_region
      %20 = dma.done [#allocation3], 512
    $region9: #{tpu_custom_call.1} parent=1 // pred_fallthru
      _
    %v21 = vld [vmem:[#allocation2] sm:$0xff]
    %v22 = vld [vmem:[#allocation2 + $0x8] sm:$0xff]
    %v23 = vld [vmem:[#allocation2 + $0x10] sm:$0xff]
    %v24 = vld [vmem:[#allocation2 + $0x18] sm:$0xff]
    %v25 = vadd.f32 %v21, 1e-10
    %v26 = vadd.f32 %v22, 1e-10
    %v27 = vadd.f32 %v23, 1e-10
    %v28 = vadd.f32 %v24, 1e-10
    %v29 = vlog2.pop %v25
    %v30 = vmul.f32 %v29, 0.6931472
    %v31 = vlog2.pop %v26
    %v32 = vmul.f32 %v31, 0.6931472
    %v33 = vlog2.pop %v27
    %v34 = vmul.f32 %v33, 0.6931472
    %v35 = vlog2.pop %v28
    %v36 = vmul.f32 %v35, 0.6931472
    %37 = vst [vmem:[#allocation5] sm:$0xff] %v30
    %38 = vst [vmem:[#allocation5 + $0x8] sm:$0xff] %v32
    %39 = vst [vmem:[#allocation5 + $0x10] sm:$0xff] %v34
    %40 = vst [vmem:[#allocation5 + $0x18] sm:$0xff] %v36
    // Predicated region
    $region10: #{tpu_custom_call.1} parent=1 // pred_check
      _
    $region11: #{tpu_custom_call.1} parent=1 // pred_check_branch
      %42 = sbr.rel (0) target = $region13
    $region12: #{tpu_custom_call.1} parent=1 // pred_region
      %s44 = ssub.s32 512, 512
      %45 = vsyncadd [#allocation4], %s44
      %s47 = sshll.u32 [#allocation5], 4
      %s48 = int_to_ptr.vmem [resolvable:$true] %s47
      %50 = dma.vmem_to_hbm [thread:$0]  %s48, 512, %s1, [#allocation4]
    $region13: #{tpu_custom_call.1} parent=1 // pred_fallthru
      _
    // Predicated region
    $region14: #{tpu_custom_call.1} parent=1 // pred_check
      _
    $region15: #{tpu_custom_call.1} parent=1 // pred_check_branch
      %52 = sbr.rel (0) target = $region17
    $region16: #{tpu_custom_call.1} parent=1 // pred_region
      %53 = dma.done [#allocation4], 512
    $region17: #{tpu_custom_call.1} parent=1 // pred_fallthru
      _
    %54 = vsyncpa [#allocation3], 1
    %55 = vsyncpa [#allocation4], 1

</llo_original>
